<compile_context>
chip_gen: v5e
topology: v5e:2x2
jax: 0.10.0
libtpu: 0.0.40
codegen_flags: <defaults>
</compile_context>

<pallas_src>
import jax
import jax.numpy as jnp
from jax import lax
from jax.experimental import pallas as pl
from jax.experimental.pallas import tpu as pltpu


def _round_up(x, m):
    return ((x + m - 1) // m) * m


def _mask_lm_kernel(x_ref, w_ref, b_ref, o_ref):
    # logits = x @ W^T + b : contract x's last axis against W's last axis so the
    # (vocab, hidden) weight is used in its native PyTorch layout (MXU consumes
    # the transposed RHS directly; no separate transpose pass in HBM).
    logits = lax.dot_general(
        x_ref[...], w_ref[...],
        dimension_numbers=(((1,), (1,)), ((), ())),
        preferred_element_type=jnp.float32,
    )
    logits = logits + b_ref[...].astype(jnp.float32)

    # Numerically stable log-softmax over the vocab axis (full vocab in-block).
    m = jnp.max(logits, axis=-1, keepdims=True)
    z = logits - m
    lse = jnp.log(jnp.sum(jnp.exp(z), axis=-1, keepdims=True))
    o_ref[...] = (z - lse).astype(o_ref.dtype)


def masked_log_model_forward(x, weight, bias, *, tm_max=512):
    """log_softmax(x @ weight.T + bias, axis=-1)  (MaskedLogModel.forward).

    x:      (..., hidden)
    weight: (vocab, hidden)   [native nn.Linear layout]
    bias:   (vocab,)
    """
    vocab, hidden = weight.shape
    assert x.shape[-1] == hidden, (x.shape, weight.shape)

    orig_lead = x.shape[:-1]
    x2d = x.reshape(-1, hidden)
    m = x2d.shape[0]

    # Pad to TPU-friendly shapes: lane dims (last) to 128, rows to the M tile.
    # For production BERT shapes (hidden/vocab multiples of 128) the pads are no-ops.
    k_pad = _round_up(hidden, 128)
    v_pad = _round_up(vocab, 128)
    tm = min(tm_max, _round_up(m, 8))
    m_pad = _round_up(m, tm)

    x_p = jnp.pad(x2d, ((0, m_pad - m), (0, k_pad - hidden)))
    w_p = jnp.pad(weight, ((0, v_pad - vocab), (0, k_pad - hidden)))
    # Padded vocab columns get a very negative bias so exp() underflows to 0 and
    # they do not perturb the log-softmax normalizer.
    b_p = jnp.pad(bias.astype(jnp.float32), (0, v_pad - vocab),
                  constant_values=-1e30).reshape(1, v_pad)

    # Explicit VMEM budget (double-buffered x/out tiles + resident W/bias),
    # clamped to v7x's 64 MiB physical VMEM so the same kernel runs everywhere.
    est_bytes = 4 * (2 * tm * k_pad + 2 * tm * v_pad + 2 * v_pad * k_pad + 2 * v_pad)
    vmem_limit = min(max(est_bytes + (2 << 20), 32 * 1024 * 1024), 64 * 1024 * 1024)

    out = pl.pallas_call(
        _mask_lm_kernel,
        out_shape=jax.ShapeDtypeStruct((m_pad, v_pad), x.dtype),
        grid_spec=pltpu.PrefetchScalarGridSpec(
            num_scalar_prefetch=0,
            grid=(pl.cdiv(m_pad, tm),),
            in_specs=[
                pl.BlockSpec((tm, k_pad), lambda i: (i, 0)),      # x row tile (pipelined)
                pl.BlockSpec((v_pad, k_pad), lambda i: (0, 0)),   # weight, VMEM-resident
                pl.BlockSpec((1, v_pad), lambda i: (0, 0)),       # bias,   VMEM-resident
            ],
            out_specs=pl.BlockSpec((tm, v_pad), lambda i: (i, 0)),
        ),
        compiler_params=pltpu.CompilerParams(
            dimension_semantics=("parallel",),  # row tiles independent -> megacore on v7x
            vmem_limit_bytes=vmem_limit,
        ),
    )(x_p, w_p, b_p)

    out = out[:m, :vocab]
    return out.reshape(*orig_lead, vocab)


def logbert_log_forward(bert_hidden, mask_lm_weight, mask_lm_bias):
    """Pallas equivalent of LOGBERTLog.forward, given the BERT encoder output.

    bert_hidden: (batch, seq, hidden) — output of self.bert(x, time_info).
    Returns the same result dict the PyTorch module populates.
    """
    # TODO(synk): the BERT encoder (self.bert) is an external module not defined
    # in the spec; this wrapper consumes its output hidden states directly.
    logkey_output = masked_log_model_forward(bert_hidden, mask_lm_weight, mask_lm_bias)
    cls_output = bert_hidden[:, 0]           # trivial slice; no kernel needed
    return {
        "logkey_output": logkey_output,
        "time_output": None,                 # time_lm is never called in forward
        "cls_output": cls_output,
        "cls_fnn_output": None,
    }


if __name__ == "__main__":
    batch, seq, hidden, vocab = 2, 8, 32, 40
    key = jax.random.PRNGKey(0)
    kx, kw, kb = jax.random.split(key, 3)

    # Deterministic parameter init (mimics nn.Linear default uniform bound).
    bound = 1.0 / (hidden ** 0.5)
    weight = jax.random.uniform(kw, (vocab, hidden), jnp.float32, -bound, bound)
    bias = jax.random.uniform(kb, (vocab,), jnp.float32, -bound, bound)

    # Stand-in for the BERT encoder output hidden states.
    x = jax.random.normal(kx, (batch, seq, hidden), jnp.float32)

    result = logbert_log_forward(x, weight, bias)
    jax.block_until_ready(result["logkey_output"])
    jax.block_until_ready(result["cls_output"])

    # Reference in plain JAX.
    logits_ref = x @ weight.T + bias
    logkey_ref = jax.nn.log_softmax(logits_ref, axis=-1)
    cls_ref = x[:, 0]

    assert result["logkey_output"].shape == (batch, seq, vocab)
    assert jnp.allclose(result["logkey_output"], logkey_ref, atol=1e-5, rtol=1e-5)
    assert jnp.allclose(result["cls_output"], cls_ref)
    assert result["time_output"] is None and result["cls_fnn_output"] is None

    print("KERNEL_OK")
</pallas_src>

<mosaic_0001>
module attributes {stable_mosaic.version = 11 : i64} {
  func.func @_mask_lm_kernel(%arg0: i32, %arg1: memref<16x128xf32, #tpu.memory_space<vmem>>, %arg2: memref<128x128xf32, #tpu.memory_space<vmem>>, %arg3: memref<1x128xf32, #tpu.memory_space<vmem>>, %arg4: memref<16x128xf32, #tpu.memory_space<vmem>>) attributes {dimension_semantics = [#tpu.dimension_semantics<parallel>], iteration_bounds = array<i64: 1>, scalar_prefetch = 0 : i64, scratch_operands = 0 : i64, tpu.core_type = #tpu.core_type<tc>, window_params = [{transform_indices = @transform_0, window_bounds = array<i64: 16, 128>}, {pipeline_mode = #tpu.pipeline_mode<synchronous>, transform_indices = @transform_1, window_bounds = array<i64: 128, 128>}, {pipeline_mode = #tpu.pipeline_mode<synchronous>, transform_indices = @transform_2, window_bounds = array<i64: 1, 128>}, {transform_indices = @transform_3, window_bounds = array<i64: 16, 128>}]} {
    %c0 = arith.constant 0 : index
    %c0_0 = arith.constant 0 : index
    %0 = vector.load %arg1[%c0, %c0_0] : memref<16x128xf32, #tpu.memory_space<vmem>>, vector<16x128xf32>
    %c0_1 = arith.constant 0 : index
    %c0_2 = arith.constant 0 : index
    %1 = vector.load %arg2[%c0_1, %c0_2] : memref<128x128xf32, #tpu.memory_space<vmem>>, vector<128x128xf32>
    %cst = arith.constant dense<0.000000e+00> : vector<16x128xf32>
    %2 = tpu.matmul %0, %1, %cst {dimension_numbers = #tpu.dot_dimension_numbers<[1], [1], [0], [0], [0, 0, 1, 0], [], []>} : vector<16x128xf32>, vector<128x128xf32>, vector<16x128xf32> -> vector<16x128xf32>
    %c0_3 = arith.constant 0 : index
    %c0_4 = arith.constant 0 : index
    %3 = vector.load %arg3[%c0_3, %c0_4] : memref<1x128xf32, #tpu.memory_space<vmem>>, vector<1x128xf32>
    %4 = vector.broadcast %3 : vector<1x128xf32> to vector<16x128xf32>
    %5 = arith.addf %2, %4 : vector<16x128xf32>
    %cst_5 = arith.constant dense<0xFF800000> : vector<16xf32>
    %6 = vector.multi_reduction <maximumf>, %5, %cst_5 [1] : vector<16x128xf32> to vector<16xf32>
    %7 = vector.shape_cast %6 : vector<16xf32> to vector<16x1xf32>
    %8 = vector.broadcast %7 : vector<16x1xf32> to vector<16x128xf32>
    %9 = arith.subf %5, %8 : vector<16x128xf32>
    %10 = math.exp %9 : vector<16x128xf32>
    %cst_6 = arith.constant dense<0.000000e+00> : vector<16xf32>
    %11 = vector.multi_reduction <add>, %10, %cst_6 [1] : vector<16x128xf32> to vector<16xf32>
    %12 = vector.shape_cast %11 : vector<16xf32> to vector<16x1xf32>
    %13 = math.log %12 : vector<16x1xf32>
    %14 = vector.broadcast %13 : vector<16x1xf32> to vector<16x128xf32>
    %15 = arith.subf %9, %14 : vector<16x128xf32>
    %c0_7 = arith.constant 0 : index
    %c0_8 = arith.constant 0 : index
    %16 = vector.load %arg4[%c0_7, %c0_8] : memref<16x128xf32, #tpu.memory_space<vmem>>, vector<16x128xf32>
    tpu.vector_store %arg4[%c0_7, %c0_8], %15 {strides = array<i32>} : memref<16x128xf32, #tpu.memory_space<vmem>>, vector<16x128xf32>,
    return
  }
  func.func @transform_0(%arg0: i32) -> (i32, i32) {
    %c0_i32 = arith.constant 0 : i32
    %c0_i32_0 = arith.constant 0 : i32
    return %arg0, %c0_i32 : i32, i32
  }
  func.func @transform_1(%arg0: i32) -> (i32, i32) {
    %c0_i32 = arith.constant 0 : i32
    %c0_i32_0 = arith.constant 0 : i32
    %c0_i32_1 = arith.constant 0 : i32
    return %c0_i32, %c0_i32_0 : i32, i32
  }
  func.func @transform_2(%arg0: i32) -> (i32, i32) {
    %c0_i32 = arith.constant 0 : i32
    %c0_i32_0 = arith.constant 0 : i32
    %c0_i32_1 = arith.constant 0 : i32
    return %c0_i32, %c0_i32_0 : i32, i32
  }
  func.func @transform_3(%arg0: i32) -> (i32, i32) {
    %c0_i32 = arith.constant 0 : i32
    %c0_i32_0 = arith.constant 0 : i32
    return %arg0, %c0_i32 : i32, i32
  }
}

</mosaic_0001>

<llo_original>
// kernel: tpu_custom_call.1
$region0: #{tpu_custom_call.1}
  #allocation0 [shape = 'u32[]', space=smem, size = 0x4, offset = 0x4, fixed_abs, tag = 'smem constant byte address 0x4 - core index']
  #allocation1 [shape = 'u32[72,128]{1,0:T(1,128)}', space=vmem, size = 0x9000, scoped, tag = 'internal scratch']
  %s0 = inlined_call_operand.hbm [shape: f32[16,128], index: 0, kind: input, shape index: {}]
  %s1 = inlined_call_operand.hbm [shape: f32[128,128], index: 1, kind: input, shape index: {}]
  %s2 = inlined_call_operand.vmem [shape: f32[1,128], index: 2, kind: input, shape index: {}]
  %s3 = inlined_call_operand.hbm [shape: f32[16,128], index: 3, kind: output, shape index: {}]
  %s4 = sld [smem:[#allocation0]]
  $region30: #{tpu_custom_call.1} parent=0
    _
  %s6 = ssub.s32 1, %s4
  %s7 = scalar_select 0, %s6, %s4
  $region1: #{tpu_custom_call.1} parent=0
    #allocation2 [shape = 'u8[8192]{0}', space=vmem, size = 0x2000, scoped, tag = 'input window, operand 0, single buffered']
    #allocation3 [shape = 's32[1]{0}', space=sflag, size = 0x4, scoped, tag = 'scoped memory for tpu_custom_call.1']
    #allocation4 [shape = 's32[1]{0}', space=sflag, size = 0x4, scoped, tag = 'scoped memory for tpu_custom_call.1']
    #allocation5 [shape = 'u8[65536]{0}', space=vmem, size = 0x10000, scoped, tag = 'input window, operand 1, single buffered']
    #allocation6 [shape = 's32[1]{0}', space=sflag, size = 0x4, scoped, tag = 'scoped memory for tpu_custom_call.1']
    #allocation7 [shape = 'u8[8192]{0}', space=vmem, size = 0x2000, scoped, tag = 'output window, operand 0, single buffered']
    %8 = vsyncpa [#allocation3], 0
    %9 = vsyncpa [#allocation6], 0
    %10 = vsyncpa [#allocation4], 0
    // Predicated region
    $region2: #{tpu_custom_call.1} parent=1 // pred_check
      _
    $region3: #{tpu_custom_call.1} parent=1 // pred_check_branch
      %12 = sbr.rel (0) target = $region5
    $region4: #{tpu_custom_call.1} parent=1 // pred_region
      %14 = vsyncadd [#allocation3], 0
      %s15 = sshll.u32 %s0, 4
      %s16 = int_to_ptr.hbm [resolvable:$true] %s15
      %s17 = sshll.u32 [#allocation2], 4
      %s18 = int_to_ptr.vmem [resolvable:$true] %s17
      %23 = dma.hbm_to_vmem [thread:$0]  %s16, 256, %s18, [#allocation3], 128, 128, 8
    $region5: #{tpu_custom_call.1} parent=1 // pred_fallthru
      _
    // Predicated region
    $region6: #{tpu_custom_call.1} parent=1 // pred_check
      _
    $region7: #{tpu_custom_call.1} parent=1 // pred_check_branch
      %25 = sbr.rel (0) target = $region9
    $region8: #{tpu_custom_call.1} parent=1 // pred_region
      %27 = vsyncadd [#allocation6], 0
      %s28 = sshll.u32 %s1, 4
      %s29 = int_to_ptr.hbm [resolvable:$true] %s28
      %s30 = sshll.u32 [#allocation5], 4
      %s31 = int_to_ptr.vmem [resolvable:$true] %s30
      %36 = dma.hbm_to_vmem [thread:$0]  %s29, 2048, %s31, [#allocation6], 128, 128, 8
    $region9: #{tpu_custom_call.1} parent=1 // pred_fallthru
      _
    // Predicated region
    $region10: #{tpu_custom_call.1} parent=1 // pred_check
      _
    $region11: #{tpu_custom_call.1} parent=1 // pred_check_branch
      %38 = sbr.rel (0) target = $region13
    $region12: #{tpu_custom_call.1} parent=1 // pred_region
      _
    $region13: #{tpu_custom_call.1} parent=1 // pred_fallthru
      _
    // Predicated region
    $region14: #{tpu_custom_call.1} parent=1 // pred_check
      _
    $region15: #{tpu_custom_call.1} parent=1 // pred_check_branch
      %40 = sbr.rel (0) target = $region17
    $region16: #{tpu_custom_call.1} parent=1 // pred_region
      %42 = dma.done [#allocation3], 256
    $region17: #{tpu_custom_call.1} parent=1 // pred_fallthru
      _
    // Predicated region
    $region18: #{tpu_custom_call.1} parent=1 // pred_check
      _
    $region19: #{tpu_custom_call.1} parent=1 // pred_check_branch
      %44 = sbr.rel (0) target = $region21
    $region20: #{tpu_custom_call.1} parent=1 // pred_region
      %46 = dma.done [#allocation6], 2048
    $region21: #{tpu_custom_call.1} parent=1 // pred_fallthru
      _
    %v47 = vld [vmem:[#allocation2] sm:$0xff]
    %v48 = vld [vmem:[#allocation2 + $0x8] sm:$0xff]
    %v49 = vld [vmem:[#allocation5] sm:$0xff]
    %v50 = vld [vmem:[#allocation5 + $0x8] sm:$0xff]
    %v51 = vld [vmem:[#allocation5 + $0x10] sm:$0xff]
    %v52 = vld [vmem:[#allocation5 + $0x18] sm:$0xff]
    %v53 = vld [vmem:[#allocation5 + $0x20] sm:$0xff]
    %v54 = vld [vmem:[#allocation5 + $0x28] sm:$0xff]
    %v55 = vld [vmem:[#allocation5 + $0x30] sm:$0xff]
    %v56 = vld [vmem:[#allocation5 + $0x38] sm:$0xff]
    %v57 = vld [vmem:[#allocation5 + $0x40] sm:$0xff]
    %v58 = vld [vmem:[#allocation5 + $0x48] sm:$0xff]
    %v59 = vld [vmem:[#allocation5 + $0x50] sm:$0xff]
    %v60 = vld [vmem:[#allocation5 + $0x58] sm:$0xff]
    %v61 = vld [vmem:[#allocation5 + $0x60] sm:$0xff]
    %v62 = vld [vmem:[#allocation5 + $0x68] sm:$0xff]
    %v63 = vld [vmem:[#allocation5 + $0x70] sm:$0xff]
    %v64 = vld [vmem:[#allocation5 + $0x78] sm:$0xff]
    %v65 = vld [vmem:[%s2] sm:$0x1]
    %v67 = vperm.slane %v65, 0
    %69 = vmatpush.xpose.msra.mxu0 %v64
    %70 = vmatpush.xpose.msra.mxu0 %v63
    %71 = vmatpush.xpose.msra.mxu0 %v62
    %72 = vmatpush.xpose.msra.mxu0 %v61
    %73 = vmatpush.xpose.msra.mxu0 %v60
    %74 = vmatpush.xpose.msra.mxu0 %v59
    %75 = vmatpush.xpose.msra.mxu0 %v58
    %76 = vmatpush.xpose.msra.mxu0 %v57
    %77 = vmatpush.xpose.msra.mxu0 %v56
    %78 = vmatpush.xpose.msra.mxu0 %v55
    %79 = vmatpush.xpose.msra.mxu0 %v54
    %80 = vmatpush.xpose.msra.mxu0 %v53
    %81 = vmatpush.xpose.msra.mxu0 %v52
    %82 = vmatpush.xpose.msra.mxu0 %v51
    %83 = vmatpush.xpose.msra.mxu0 %v50
    %84 = vmatpush.xpose.msra.mxu0 %v49
    %85 = vmatmul.f32.gmra.mxu0 %v47
    %v86 = vpop.f32.mrf.mxu0
    %v87 = vadd.f32 %v67, %v86
    %88 = vmatmul.f32.gmra.mxu0 %v48
    %v89 = vpop.f32.mrf.mxu0
    %v90 = vadd.f32 %v67, %v89
    %91 = vdwg.mxu0
    %92 = vmax.xlane.f32.xlu0 %v87
    %v93 = vpop.xlane.xlu0 %92
    %94 = vmax.xlane.f32.xlu0 %v90
    %v95 = vpop.xlane.xlu0 %94
    %v96 = vsub.f32 %v87, %v93
    %v97 = vsub.f32 %v90, %v95
    %v98 = vmul.f32 %v96, 1.442695
    %v99 = vpow.pop %v98
    %v100 = vmul.f32 %v97, 1.442695
    %v101 = vpow.pop %v100
    %102 = vadd.xlane.f32.xlu0 %v99
    %v103 = vpop.xlane.xlu0 %102
    %104 = vadd.xlane.f32.xlu0 %v101
    %v105 = vpop.xlane.xlu0 %104
    %v106 = vlog2.pop %v103
    %v107 = vmul.f32 %v106, 0.6931472
    %v108 = vlog2.pop %v105
    %v109 = vmul.f32 %v108, 0.6931472
    %v110 = vsub.f32 %v96, %v107
    %v111 = vsub.f32 %v97, %v109
    %112 = vst [vmem:[#allocation7] sm:$0xff] %v110
    %113 = vst [vmem:[#allocation7 + $0x8] sm:$0xff] %v111
    // Predicated region
    $region22: #{tpu_custom_call.1} parent=1 // pred_check
      _
    $region23: #{tpu_custom_call.1} parent=1 // pred_check_branch
      %115 = sbr.rel (0) target = $region25
    $region24: #{tpu_custom_call.1} parent=1 // pred_region
      %117 = vsyncadd [#allocation4], 0
      %s118 = sshll.u32 [#allocation7], 4
      %s119 = int_to_ptr.vmem [resolvable:$true] %s118
      %s120 = sshll.u32 %s3, 4
      %s121 = int_to_ptr.hbm [resolvable:$true] %s120
      %126 = dma.vmem_to_hbm [thread:$0]  %s119, 256, %s121, [#allocation4], 128, 128, 8
    $region25: #{tpu_custom_call.1} parent=1 // pred_fallthru
      _
    // Predicated region
    $region26: #{tpu_custom_call.1} parent=1 // pred_check
      _
    $region27: #{tpu_custom_call.1} parent=1 // pred_check_branch
      %128 = sbr.rel (0) target = $region29
    $region28: #{tpu_custom_call.1} parent=1 // pred_region
      %130 = dma.done [#allocation4], 256
    $region29: #{tpu_custom_call.1} parent=1 // pred_fallthru
      _
    %131 = vsyncpa [#allocation3], 1
    %132 = vsyncpa [#allocation6], 1
    %133 = vsyncpa [#allocation4], 1

</llo_original>
